<compile_context>
chip_gen: v7x
topology: tpu7x:2x2x1
jax: 0.10.0
libtpu: 0.0.40
codegen_flags: <defaults>
</compile_context>

<pallas_src>
import functools

import jax
import jax.numpy as jnp
from jax import lax
from jax.experimental import pallas as pl
from jax.experimental.pallas import tpu as pltpu


# --------------------------- in-kernel building blocks ----------------------

def _pointwise(x, wpw, bpw):
    """Both-branch 1x1 conv in (C, HW) layout: (C2,Cin) @ (Cin,HW) + (C2,1)."""
    C2, Cin = wpw.shape
    HW = x.shape[1]
    if Cin < 32:
        # Tiny K: unrolled VPU broadcast-MAC (a K=4 matmul wastes the MXU,
        # especially on v5e).
        t = jnp.zeros((C2, HW), jnp.float32)
        for c in range(Cin):
            t = t + wpw[:, c:c + 1] * x[c:c + 1, :]
    else:
        # TODO(synk): bf16 operands + f32 accumulate at production channels.
        t = jnp.dot(wpw, x, preferred_element_type=jnp.float32)
    return t + bpw


def _depthwise3x3(t, wdw, bdw, tap_masks, H, W):
    """Dual-branch depthwise 3x3 on (C2, H*W): 9 lane rolls + edge masks."""
    HW = H * W
    acc = jnp.zeros_like(t)
    for i in range(3):
        for j in range(3):
            d = (i - 1) * W + (j - 1)                 # flat offset of tap (i,j)
            s = t if d == 0 else pltpu.roll(t, shift=(-d) % HW, axis=1)
            m = tap_masks[(i, j)]
            if m is not None:                          # zero the halo reads
                s = jnp.where(m, s, 0.0)
            acc = acc + wdw[:, i * 3 + j:i * 3 + j + 1] * s
    return acc + bdw


def _span_conv(x, wpw, bpw, wdw, bdw, tap_masks, H, W):
    C2 = wpw.shape[0]
    Cout = C2 // 2
    t = _pointwise(x, wpw, bpw)
    d = _depthwise3x3(t, wdw, bdw, tap_masks, H, W)
    return d[:Cout, :] + d[Cout:, :]                   # branch sum


# ------------------------------ fused kernel --------------------------------

def _belly_block_kernel(x_ref,
                        w1pw_ref, b1pw_ref, w1dw_ref, b1dw_ref,
                        w2pw_ref, b2pw_ref, w2dw_ref, b2dw_ref,
                        o_ref, *, H, W):
    """One batch element, fully resident in VMEM, layout (C, H*W)."""
    HW = H * W

    # Edge-validity masks for the 3x3 halo, shared by both SpanConvs.
    hw = lax.broadcasted_iota(jnp.int32, (1, HW), 1)
    w_idx = hw % W
    not_top = hw >= W                 # tap row i=0 reads h-1 (invalid at h=0)
    not_bot = hw < (H - 1) * W        # tap row i=2 reads h+1 (invalid at h=H-1)
    not_left = w_idx >= 1             # tap col j=0 reads w-1 (invalid at w=0)
    not_right = w_idx <= W - 2        # tap col j=2 reads w+1 (invalid at w=W-1)
    tap_masks = {}
    for i in range(3):
        for j in range(3):
            m = None
            if i == 0:
                m = not_top
            elif i == 2:
                m = not_bot
            if j == 0:
                m = not_left if m is None else jnp.logical_and(m, not_left)
            elif j == 2:
                m = not_right if m is None else jnp.logical_and(m, not_right)
            tap_masks[(i, j)] = m

    x = x_ref[...].astype(jnp.float32)

    # conv1 + fused ReLU (intermediate never leaves VMEM).
    r = _span_conv(x, w1pw_ref[...], b1pw_ref[...], w1dw_ref[...], b1dw_ref[...],
                   tap_masks, H, W)
    r = jnp.maximum(r, 0.0)

    # conv2.
    out = _span_conv(r, w2pw_ref[...], b2pw_ref[...], w2dw_ref[...], b2dw_ref[...],
                     tap_masks, H, W)
    o_ref[...] = out.astype(o_ref.dtype)


# ----------------------------- module wrapper -------------------------------

def belly_block_forward(x_nchw, params):
    """Belly_Block forward. x_nchw: [N, C, H, W] float32 -> [N, C, H, W]."""
    N, C, H, W = x_nchw.shape
    HW = H * W
    x2 = x_nchw.reshape(N, C, HW)                 # contiguous reshape (free)

    p1, p2 = params["conv1"], params["conv2"]
    C2 = p1["pw_w"].shape[0]
    Cin1 = p1["pw_w"].shape[1]
    Cin2 = p2["pw_w"].shape[1]

    kernel = functools.partial(_belly_block_kernel, H=H, W=W)
    out = pl.pallas_call(
        kernel,
        out_shape=jax.ShapeDtypeStruct((N, C, HW), jnp.float32),
        grid=(N,),
        in_specs=[
            pl.BlockSpec((None, C, HW), lambda n: (n, 0, 0)),     # activation
            pl.BlockSpec((C2, Cin1), lambda n: (0, 0)),           # conv1 pw W
            pl.BlockSpec((C2, 1), lambda n: (0, 0)),              # conv1 pw b
            pl.BlockSpec((C2, 9), lambda n: (0, 0)),              # conv1 dw W
            pl.BlockSpec((C2, 1), lambda n: (0, 0)),              # conv1 dw b
            pl.BlockSpec((C2, Cin2), lambda n: (0, 0)),           # conv2 pw W
            pl.BlockSpec((C2, 1), lambda n: (0, 0)),              # conv2 pw b
            pl.BlockSpec((C2, 9), lambda n: (0, 0)),              # conv2 dw W
            pl.BlockSpec((C2, 1), lambda n: (0, 0)),              # conv2 dw b
        ],
        out_specs=pl.BlockSpec((None, C, HW), lambda n: (n, 0, 0)),
        compiler_params=pltpu.CompilerParams(
            dimension_semantics=("parallel",)),
    )(x2,
      p1["pw_w"], p1["pw_b"], p1["dw_w"], p1["dw_b"],
      p2["pw_w"], p2["pw_b"], p2["dw_w"], p2["dw_b"])
    return out.reshape(N, C, H, W)


# ----------------------------- parameter init -------------------------------

def init_span_conv_params(key, cin, cout, ksize=3):
    """Random params for one SpanConv, packed for the fused kernel:
    branch 1 = channels [0:cout], branch 2 = [cout:2*cout]."""
    ks = jax.random.split(key, 8)
    scale = 0.1
    pw1_w = scale * jax.random.normal(ks[0], (cout, cin), jnp.float32)
    pw1_b = scale * jax.random.normal(ks[1], (cout,), jnp.float32)
    dw1_w = scale * jax.random.normal(ks[2], (cout, ksize, ksize), jnp.float32)
    dw1_b = scale * jax.random.normal(ks[3], (cout,), jnp.float32)
    pw2_w = scale * jax.random.normal(ks[4], (cout, cin), jnp.float32)
    pw2_b = scale * jax.random.normal(ks[5], (cout,), jnp.float32)
    dw2_w = scale * jax.random.normal(ks[6], (cout, ksize, ksize), jnp.float32)
    dw2_b = scale * jax.random.normal(ks[7], (cout,), jnp.float32)
    c2 = 2 * cout
    return {
        "pw_w": jnp.concatenate([pw1_w, pw2_w], axis=0),                     # (2C, Cin)
        "pw_b": jnp.concatenate([pw1_b, pw2_b], axis=0)[:, None],            # (2C, 1)
        "dw_w": jnp.concatenate([dw1_w, dw2_w], axis=0).reshape(c2, ksize * ksize),  # (2C, 9)
        "dw_b": jnp.concatenate([dw1_b, dw2_b], axis=0)[:, None],            # (2C, 1)
    }


def init_belly_block_params(key, in_planes):
    k1, k2 = jax.random.split(key, 2)
    return {
        "conv1": init_span_conv_params(k1, in_planes, in_planes, 3),
        "conv2": init_span_conv_params(k2, in_planes, in_planes, 3),
    }


# ----------------------------- pure-JAX reference ---------------------------

def _ref_span_conv(x_nchw, p, apply_relu):
    c2, cin = p["pw_w"].shape
    cout = c2 // 2
    t = lax.conv_general_dilated(
        x_nchw, p["pw_w"].reshape(c2, cin, 1, 1), (1, 1), "SAME",
        dimension_numbers=("NCHW", "OIHW", "NCHW"),
        precision=lax.Precision.HIGHEST) + p["pw_b"].reshape(1, c2, 1, 1)
    d = lax.conv_general_dilated(
        t, p["dw_w"].reshape(c2, 1, 3, 3), (1, 1), "SAME",
        dimension_numbers=("NCHW", "OIHW", "NCHW"),
        feature_group_count=c2,
        precision=lax.Precision.HIGHEST) + p["dw_b"].reshape(1, c2, 1, 1)
    out = d[:, :cout] + d[:, cout:]
    if apply_relu:
        out = jnp.maximum(out, 0.0)
    return out


def _ref_belly_block(x_nchw, params):
    r = _ref_span_conv(x_nchw, params["conv1"], True)
    r = _ref_span_conv(r, params["conv2"], False)
    return r


# ----------------------------------- main -----------------------------------

if __name__ == "__main__":
    key = jax.random.PRNGKey(0)
    kx, kp = jax.random.split(key)

    N, C, H, W = 2, 4, 16, 16
    x = jax.random.normal(kx, (N, C, H, W), jnp.float32)
    params = init_belly_block_params(kp, C)

    out = jax.jit(belly_block_forward)(x, params)
    out = jax.block_until_ready(out)

    assert out.shape == (N, C, H, W), out.shape
    assert out.dtype == jnp.float32

    ref = jax.block_until_ready(jax.jit(_ref_belly_block)(x, params))
    assert jnp.allclose(out, ref, atol=2e-4, rtol=2e-4), \
        float(jnp.max(jnp.abs(out - ref)))

    print("KERNEL_OK")
</pallas_src>

<mosaic_0001>
module attributes {stable_mosaic.version = 11 : i64} {
  func.func @_belly_block_kernel(%arg0: i32, %arg1: memref<1x4x256xf32, #tpu.memory_space<vmem>>, %arg2: memref<8x4xf32, #tpu.memory_space<vmem>>, %arg3: memref<8x1xf32, #tpu.memory_space<vmem>>, %arg4: memref<8x9xf32, #tpu.memory_space<vmem>>, %arg5: memref<8x1xf32, #tpu.memory_space<vmem>>, %arg6: memref<8x4xf32, #tpu.memory_space<vmem>>, %arg7: memref<8x1xf32, #tpu.memory_space<vmem>>, %arg8: memref<8x9xf32, #tpu.memory_space<vmem>>, %arg9: memref<8x1xf32, #tpu.memory_space<vmem>>, %arg10: memref<1x4x256xf32, #tpu.memory_space<vmem>>) attributes {dimension_semantics = [#tpu.dimension_semantics<parallel>], iteration_bounds = array<i64: 2>, scalar_prefetch = 0 : i64, scratch_operands = 0 : i64, tpu.core_type = #tpu.core_type<tc>, window_params = [{transform_indices = @transform_0, window_bounds = array<i64: 1, 4, 256>}, {pipeline_mode = #tpu.pipeline_mode<synchronous>, transform_indices = @transform_1, window_bounds = array<i64: 8, 4>}, {pipeline_mode = #tpu.pipeline_mode<synchronous>, transform_indices = @transform_2, window_bounds = array<i64: 8, 1>}, {pipeline_mode = #tpu.pipeline_mode<synchronous>, transform_indices = @transform_3, window_bounds = array<i64: 8, 9>}, {pipeline_mode = #tpu.pipeline_mode<synchronous>, transform_indices = @transform_4, window_bounds = array<i64: 8, 1>}, {pipeline_mode = #tpu.pipeline_mode<synchronous>, transform_indices = @transform_5, window_bounds = array<i64: 8, 4>}, {pipeline_mode = #tpu.pipeline_mode<synchronous>, transform_indices = @transform_6, window_bounds = array<i64: 8, 1>}, {pipeline_mode = #tpu.pipeline_mode<synchronous>, transform_indices = @transform_7, window_bounds = array<i64: 8, 9>}, {pipeline_mode = #tpu.pipeline_mode<synchronous>, transform_indices = @transform_8, window_bounds = array<i64: 8, 1>}, {transform_indices = @transform_9, window_bounds = array<i64: 1, 4, 256>}]} {
    %0 = tpu.iota {dimensions = array<i32: 1>} : vector<1x256xi32>
    %c16_i32 = arith.constant 16 : i32
    %c0_i32 = arith.constant 0 : i32
    %1 = arith.cmpi eq, %c16_i32, %c0_i32 : i32
    %c1_i32 = arith.constant 1 : i32
    %2 = arith.select %1, %c1_i32, %c16_i32 : i32
    %3 = vector.broadcast %2 : i32 to vector<1x256xi32>
    %4 = arith.remsi %0, %3 : vector<1x256xi32>
    %c0_i32_0 = arith.constant 0 : i32
    %5 = vector.broadcast %c0_i32_0 : i32 to vector<1x256xi32>
    %6 = arith.cmpi ne, %4, %5 : vector<1x256xi32>
    %c0_i32_1 = arith.constant 0 : i32
    %7 = vector.broadcast %c0_i32_1 : i32 to vector<1x256xi32>
    %8 = arith.cmpi slt, %4, %7 : vector<1x256xi32>
    %c0_i32_2 = arith.constant 0 : i32
    %9 = arith.cmpi slt, %2, %c0_i32_2 : i32
    %10 = vector.broadcast %9 : i1 to vector<1x256xi1>
    %11 = vector.broadcast %10 : vector<1x256xi1> to vector<1x256xi1>
    %12 = arith.xori %8, %11 : vector<1x256xi1>
    %13 = arith.andi %12, %6 : vector<1x256xi1>
    %14 = vector.broadcast %2 : i32 to vector<1x256xi32>
    %15 = arith.addi %4, %14 : vector<1x256xi32>
    %16 = arith.select %13, %15, %4 : vector<1x256xi1>, vector<1x256xi32>
    %c16_i32_3 = arith.constant 16 : i32
    %17 = vector.broadcast %c16_i32_3 : i32 to vector<1x256xi32>
    %18 = arith.cmpi sge, %0, %17 : vector<1x256xi32>
    %c240_i32 = arith.constant 240 : i32
    %19 = vector.broadcast %c240_i32 : i32 to vector<1x256xi32>
    %20 = arith.cmpi slt, %0, %19 : vector<1x256xi32>
    %c1_i32_4 = arith.constant 1 : i32
    %21 = vector.broadcast %c1_i32_4 : i32 to vector<1x256xi32>
    %22 = arith.cmpi sge, %16, %21 : vector<1x256xi32>
    %c14_i32 = arith.constant 14 : i32
    %23 = vector.broadcast %c14_i32 : i32 to vector<1x256xi32>
    %24 = arith.cmpi sle, %16, %23 : vector<1x256xi32>
    %25 = arith.andi %18, %22 : vector<1x256xi1>
    %26 = arith.andi %18, %24 : vector<1x256xi1>
    %27 = arith.andi %20, %22 : vector<1x256xi1>
    %28 = arith.andi %20, %24 : vector<1x256xi1>
    %c0 = arith.constant 0 : index
    %c0_5 = arith.constant 0 : index
    %c0_6 = arith.constant 0 : index
    %29 = vector.load %arg1[%c0, %c0_5, %c0_6] : memref<1x4x256xf32, #tpu.memory_space<vmem>>, vector<1x4x256xf32>
    %30 = vector.shape_cast %29 : vector<1x4x256xf32> to vector<4x256xf32>
    %c0_7 = arith.constant 0 : index
    %c0_8 = arith.constant 0 : index
    %31 = vector.load %arg2[%c0_7, %c0_8] : memref<8x4xf32, #tpu.memory_space<vmem>>, vector<8x4xf32>
    %c0_9 = arith.constant 0 : index
    %c0_10 = arith.constant 0 : index
    %32 = vector.load %arg3[%c0_9, %c0_10] : memref<8x1xf32, #tpu.memory_space<vmem>>, vector<8x1xf32>
    %c0_11 = arith.constant 0 : index
    %c0_12 = arith.constant 0 : index
    %33 = vector.load %arg4[%c0_11, %c0_12] : memref<8x9xf32, #tpu.memory_space<vmem>>, vector<8x9xf32>
    %c0_13 = arith.constant 0 : index
    %c0_14 = arith.constant 0 : index
    %34 = vector.load %arg5[%c0_13, %c0_14] : memref<8x1xf32, #tpu.memory_space<vmem>>, vector<8x1xf32>
    %cst = arith.constant 0.000000e+00 : f32
    %35 = vector.broadcast %cst : f32 to vector<8x256xf32>
    %36 = vector.extract_strided_slice %31 {offsets = [0, 0], sizes = [8, 1], strides = [1, 1]} : vector<8x4xf32> to vector<8x1xf32>
    %37 = vector.extract_strided_slice %30 {offsets = [0, 0], sizes = [1, 256], strides = [1, 1]} : vector<4x256xf32> to vector<1x256xf32>
    %38 = vector.broadcast %36 : vector<8x1xf32> to vector<8x256xf32>
    %39 = vector.broadcast %37 : vector<1x256xf32> to vector<8x256xf32>
    %40 = arith.mulf %38, %39 : vector<8x256xf32>
    %41 = arith.addf %35, %40 : vector<8x256xf32>
    %42 = vector.extract_strided_slice %31 {offsets = [0, 1], sizes = [8, 1], strides = [1, 1]} : vector<8x4xf32> to vector<8x1xf32>
    %43 = vector.extract_strided_slice %30 {offsets = [1, 0], sizes = [1, 256], strides = [1, 1]} : vector<4x256xf32> to vector<1x256xf32>
    %44 = vector.broadcast %42 : vector<8x1xf32> to vector<8x256xf32>
    %45 = vector.broadcast %43 : vector<1x256xf32> to vector<8x256xf32>
    %46 = arith.mulf %44, %45 : vector<8x256xf32>
    %47 = arith.addf %41, %46 : vector<8x256xf32>
    %48 = vector.extract_strided_slice %31 {offsets = [0, 2], sizes = [8, 1], strides = [1, 1]} : vector<8x4xf32> to vector<8x1xf32>
    %49 = vector.extract_strided_slice %30 {offsets = [2, 0], sizes = [1, 256], strides = [1, 1]} : vector<4x256xf32> to vector<1x256xf32>
    %50 = vector.broadcast %48 : vector<8x1xf32> to vector<8x256xf32>
    %51 = vector.broadcast %49 : vector<1x256xf32> to vector<8x256xf32>
    %52 = arith.mulf %50, %51 : vector<8x256xf32>
    %53 = arith.addf %47, %52 : vector<8x256xf32>
    %54 = vector.extract_strided_slice %31 {offsets = [0, 3], sizes = [8, 1], strides = [1, 1]} : vector<8x4xf32> to vector<8x1xf32>
    %55 = vector.extract_strided_slice %30 {offsets = [3, 0], sizes = [1, 256], strides = [1, 1]} : vector<4x256xf32> to vector<1x256xf32>
    %56 = vector.broadcast %54 : vector<8x1xf32> to vector<8x256xf32>
    %57 = vector.broadcast %55 : vector<1x256xf32> to vector<8x256xf32>
    %58 = arith.mulf %56, %57 : vector<8x256xf32>
    %59 = arith.addf %53, %58 : vector<8x256xf32>
    %60 = vector.broadcast %32 : vector<8x1xf32> to vector<8x256xf32>
    %61 = arith.addf %59, %60 : vector<8x256xf32>
    %cst_15 = arith.constant 0.000000e+00 : f32
    %62 = vector.broadcast %cst_15 : f32 to vector<8x256xf32>
    %c17_i32 = arith.constant 17 : i32
    %63 = tpu.dynamic_rotate %61 by %c17_i32 dim 1 : vector<8x256xf32>, i32 -> vector<8x256xf32>
    %cst_16 = arith.constant 0.000000e+00 : f32
    %64 = vector.shape_cast %25 : vector<1x256xi1> to vector<1x256xi1>
    %65 = vector.broadcast %64 : vector<1x256xi1> to vector<8x256xi1>
    %66 = vector.broadcast %cst_16 : f32 to vector<8x256xf32>
    %67 = arith.select %65, %63, %66 : vector<8x256xi1>, vector<8x256xf32>
    %68 = vector.extract_strided_slice %33 {offsets = [0, 0], sizes = [8, 1], strides = [1, 1]} : vector<8x9xf32> to vector<8x1xf32>
    %69 = vector.broadcast %68 : vector<8x1xf32> to vector<8x256xf32>
    %70 = arith.mulf %69, %67 : vector<8x256xf32>
    %71 = arith.addf %62, %70 : vector<8x256xf32>
    %c16_i32_17 = arith.constant 16 : i32
    %72 = tpu.dynamic_rotate %61 by %c16_i32_17 dim 1 : vector<8x256xf32>, i32 -> vector<8x256xf32>
    %cst_18 = arith.constant 0.000000e+00 : f32
    %73 = vector.shape_cast %18 : vector<1x256xi1> to vector<1x256xi1>
    %74 = vector.broadcast %73 : vector<1x256xi1> to vector<8x256xi1>
    %75 = vector.broadcast %cst_18 : f32 to vector<8x256xf32>
    %76 = arith.select %74, %72, %75 : vector<8x256xi1>, vector<8x256xf32>
    %77 = vector.extract_strided_slice %33 {offsets = [0, 1], sizes = [8, 1], strides = [1, 1]} : vector<8x9xf32> to vector<8x1xf32>
    %78 = vector.broadcast %77 : vector<8x1xf32> to vector<8x256xf32>
    %79 = arith.mulf %78, %76 : vector<8x256xf32>
    %80 = arith.addf %71, %79 : vector<8x256xf32>
    %c15_i32 = arith.constant 15 : i32
    %81 = tpu.dynamic_rotate %61 by %c15_i32 dim 1 : vector<8x256xf32>, i32 -> vector<8x256xf32>
    %cst_19 = arith.constant 0.000000e+00 : f32
    %82 = vector.shape_cast %26 : vector<1x256xi1> to vector<1x256xi1>
    %83 = vector.broadcast %82 : vector<1x256xi1> to vector<8x256xi1>
    %84 = vector.broadcast %cst_19 : f32 to vector<8x256xf32>
    %85 = arith.select %83, %81, %84 : vector<8x256xi1>, vector<8x256xf32>
    %86 = vector.extract_strided_slice %33 {offsets = [0, 2], sizes = [8, 1], strides = [1, 1]} : vector<8x9xf32> to vector<8x1xf32>
    %87 = vector.broadcast %86 : vector<8x1xf32> to vector<8x256xf32>
    %88 = arith.mulf %87, %85 : vector<8x256xf32>
    %89 = arith.addf %80, %88 : vector<8x256xf32>
    %c1_i32_20 = arith.constant 1 : i32
    %90 = tpu.dynamic_rotate %61 by %c1_i32_20 dim 1 : vector<8x256xf32>, i32 -> vector<8x256xf32>
    %cst_21 = arith.constant 0.000000e+00 : f32
    %91 = vector.shape_cast %22 : vector<1x256xi1> to vector<1x256xi1>
    %92 = vector.broadcast %91 : vector<1x256xi1> to vector<8x256xi1>
    %93 = vector.broadcast %cst_21 : f32 to vector<8x256xf32>
    %94 = arith.select %92, %90, %93 : vector<8x256xi1>, vector<8x256xf32>
    %95 = vector.extract_strided_slice %33 {offsets = [0, 3], sizes = [8, 1], strides = [1, 1]} : vector<8x9xf32> to vector<8x1xf32>
    %96 = vector.broadcast %95 : vector<8x1xf32> to vector<8x256xf32>
    %97 = arith.mulf %96, %94 : vector<8x256xf32>
    %98 = arith.addf %89, %97 : vector<8x256xf32>
    %99 = vector.extract_strided_slice %33 {offsets = [0, 4], sizes = [8, 1], strides = [1, 1]} : vector<8x9xf32> to vector<8x1xf32>
    %100 = vector.broadcast %99 : vector<8x1xf32> to vector<8x256xf32>
    %101 = arith.mulf %100, %61 : vector<8x256xf32>
    %102 = arith.addf %98, %101 : vector<8x256xf32>
    %c255_i32 = arith.constant 255 : i32
    %103 = tpu.dynamic_rotate %61 by %c255_i32 dim 1 : vector<8x256xf32>, i32 -> vector<8x256xf32>
    %cst_22 = arith.constant 0.000000e+00 : f32
    %104 = vector.shape_cast %24 : vector<1x256xi1> to vector<1x256xi1>
    %105 = vector.broadcast %104 : vector<1x256xi1> to vector<8x256xi1>
    %106 = vector.broadcast %cst_22 : f32 to vector<8x256xf32>
    %107 = arith.select %105, %103, %106 : vector<8x256xi1>, vector<8x256xf32>
    %108 = vector.extract_strided_slice %33 {offsets = [0, 5], sizes = [8, 1], strides = [1, 1]} : vector<8x9xf32> to vector<8x1xf32>
    %109 = vector.broadcast %108 : vector<8x1xf32> to vector<8x256xf32>
    %110 = arith.mulf %109, %107 : vector<8x256xf32>
    %111 = arith.addf %102, %110 : vector<8x256xf32>
    %c241_i32 = arith.constant 241 : i32
    %112 = tpu.dynamic_rotate %61 by %c241_i32 dim 1 : vector<8x256xf32>, i32 -> vector<8x256xf32>
    %cst_23 = arith.constant 0.000000e+00 : f32
    %113 = vector.shape_cast %27 : vector<1x256xi1> to vector<1x256xi1>
    %114 = vector.broadcast %113 : vector<1x256xi1> to vector<8x256xi1>
    %115 = vector.broadcast %cst_23 : f32 to vector<8x256xf32>
    %116 = arith.select %114, %112, %115 : vector<8x256xi1>, vector<8x256xf32>
    %117 = vector.extract_strided_slice %33 {offsets = [0, 6], sizes = [8, 1], strides = [1, 1]} : vector<8x9xf32> to vector<8x1xf32>
    %118 = vector.broadcast %117 : vector<8x1xf32> to vector<8x256xf32>
    %119 = arith.mulf %118, %116 : vector<8x256xf32>
    %120 = arith.addf %111, %119 : vector<8x256xf32>
    %c240_i32_24 = arith.constant 240 : i32
    %121 = tpu.dynamic_rotate %61 by %c240_i32_24 dim 1 : vector<8x256xf32>, i32 -> vector<8x256xf32>
    %cst_25 = arith.constant 0.000000e+00 : f32
    %122 = vector.shape_cast %20 : vector<1x256xi1> to vector<1x256xi1>
    %123 = vector.broadcast %122 : vector<1x256xi1> to vector<8x256xi1>
    %124 = vector.broadcast %cst_25 : f32 to vector<8x256xf32>
    %125 = arith.select %123, %121, %124 : vector<8x256xi1>, vector<8x256xf32>
    %126 = vector.extract_strided_slice %33 {offsets = [0, 7], sizes = [8, 1], strides = [1, 1]} : vector<8x9xf32> to vector<8x1xf32>
    %127 = vector.broadcast %126 : vector<8x1xf32> to vector<8x256xf32>
    %128 = arith.mulf %127, %125 : vector<8x256xf32>
    %129 = arith.addf %120, %128 : vector<8x256xf32>
    %c239_i32 = arith.constant 239 : i32
    %130 = tpu.dynamic_rotate %61 by %c239_i32 dim 1 : vector<8x256xf32>, i32 -> vector<8x256xf32>
    %cst_26 = arith.constant 0.000000e+00 : f32
    %131 = vector.shape_cast %28 : vector<1x256xi1> to vector<1x256xi1>
    %132 = vector.broadcast %131 : vector<1x256xi1> to vector<8x256xi1>
    %133 = vector.broadcast %cst_26 : f32 to vector<8x256xf32>
    %134 = arith.select %132, %130, %133 : vector<8x256xi1>, vector<8x256xf32>
    %135 = vector.extract_strided_slice %33 {offsets = [0, 8], sizes = [8, 1], strides = [1, 1]} : vector<8x9xf32> to vector<8x1xf32>
    %136 = vector.broadcast %135 : vector<8x1xf32> to vector<8x256xf32>
    %137 = arith.mulf %136, %134 : vector<8x256xf32>
    %138 = arith.addf %129, %137 : vector<8x256xf32>
    %139 = vector.broadcast %34 : vector<8x1xf32> to vector<8x256xf32>
    %140 = arith.addf %138, %139 : vector<8x256xf32>
    %141 = vector.extract_strided_slice %140 {offsets = [0, 0], sizes = [4, 256], strides = [1, 1]} : vector<8x256xf32> to vector<4x256xf32>
    %142 = vector.extract_strided_slice %140 {offsets = [4, 0], sizes = [4, 256], strides = [1, 1]} : vector<8x256xf32> to vector<4x256xf32>
    %143 = arith.addf %141, %142 : vector<4x256xf32>
    %cst_27 = arith.constant 0.000000e+00 : f32
    %144 = vector.broadcast %cst_27 : f32 to vector<4x256xf32>
    %145 = arith.maximumf %143, %144 : vector<4x256xf32>
    %c0_28 = arith.constant 0 : index
    %c0_29 = arith.constant 0 : index
    %146 = vector.load %arg6[%c0_28, %c0_29] : memref<8x4xf32, #tpu.memory_space<vmem>>, vector<8x4xf32>
    %c0_30 = arith.constant 0 : index
    %c0_31 = arith.constant 0 : index
    %147 = vector.load %arg7[%c0_30, %c0_31] : memref<8x1xf32, #tpu.memory_space<vmem>>, vector<8x1xf32>
    %c0_32 = arith.constant 0 : index
    %c0_33 = arith.constant 0 : index
    %148 = vector.load %arg8[%c0_32, %c0_33] : memref<8x9xf32, #tpu.memory_space<vmem>>, vector<8x9xf32>
    %c0_34 = arith.constant 0 : index
    %c0_35 = arith.constant 0 : index
    %149 = vector.load %arg9[%c0_34, %c0_35] : memref<8x1xf32, #tpu.memory_space<vmem>>, vector<8x1xf32>
    %cst_36 = arith.constant 0.000000e+00 : f32
    %150 = vector.broadcast %cst_36 : f32 to vector<8x256xf32>
    %151 = vector.extract_strided_slice %146 {offsets = [0, 0], sizes = [8, 1], strides = [1, 1]} : vector<8x4xf32> to vector<8x1xf32>
    %152 = vector.extract_strided_slice %145 {offsets = [0, 0], sizes = [1, 256], strides = [1, 1]} : vector<4x256xf32> to vector<1x256xf32>
    %153 = vector.broadcast %151 : vector<8x1xf32> to vector<8x256xf32>
    %154 = vector.broadcast %152 : vector<1x256xf32> to vector<8x256xf32>
    %155 = arith.mulf %153, %154 : vector<8x256xf32>
    %156 = arith.addf %150, %155 : vector<8x256xf32>
    %157 = vector.extract_strided_slice %146 {offsets = [0, 1], sizes = [8, 1], strides = [1, 1]} : vector<8x4xf32> to vector<8x1xf32>
    %158 = vector.extract_strided_slice %145 {offsets = [1, 0], sizes = [1, 256], strides = [1, 1]} : vector<4x256xf32> to vector<1x256xf32>
    %159 = vector.broadcast %157 : vector<8x1xf32> to vector<8x256xf32>
    %160 = vector.broadcast %158 : vector<1x256xf32> to vector<8x256xf32>
    %161 = arith.mulf %159, %160 : vector<8x256xf32>
    %162 = arith.addf %156, %161 : vector<8x256xf32>
    %163 = vector.extract_strided_slice %146 {offsets = [0, 2], sizes = [8, 1], strides = [1, 1]} : vector<8x4xf32> to vector<8x1xf32>
    %164 = vector.extract_strided_slice %145 {offsets = [2, 0], sizes = [1, 256], strides = [1, 1]} : vector<4x256xf32> to vector<1x256xf32>
    %165 = vector.broadcast %163 : vector<8x1xf32> to vector<8x256xf32>
    %166 = vector.broadcast %164 : vector<1x256xf32> to vector<8x256xf32>
    %167 = arith.mulf %165, %166 : vector<8x256xf32>
    %168 = arith.addf %162, %167 : vector<8x256xf32>
    %169 = vector.extract_strided_slice %146 {offsets = [0, 3], sizes = [8, 1], strides = [1, 1]} : vector<8x4xf32> to vector<8x1xf32>
    %170 = vector.extract_strided_slice %145 {offsets = [3, 0], sizes = [1, 256], strides = [1, 1]} : vector<4x256xf32> to vector<1x256xf32>
    %171 = vector.broadcast %169 : vector<8x1xf32> to vector<8x256xf32>
    %172 = vector.broadcast %170 : vector<1x256xf32> to vector<8x256xf32>
    %173 = arith.mulf %171, %172 : vector<8x256xf32>
    %174 = arith.addf %168, %173 : vector<8x256xf32>
    %175 = vector.broadcast %147 : vector<8x1xf32> to vector<8x256xf32>
    %176 = arith.addf %174, %175 : vector<8x256xf32>
    %cst_37 = arith.constant 0.000000e+00 : f32
    %177 = vector.broadcast %cst_37 : f32 to vector<8x256xf32>
    %c17_i32_38 = arith.constant 17 : i32
    %178 = tpu.dynamic_rotate %176 by %c17_i32_38 dim 1 : vector<8x256xf32>, i32 -> vector<8x256xf32>
    %cst_39 = arith.constant 0.000000e+00 : f32
    %179 = vector.shape_cast %25 : vector<1x256xi1> to vector<1x256xi1>
    %180 = vector.broadcast %179 : vector<1x256xi1> to vector<8x256xi1>
    %181 = vector.broadcast %cst_39 : f32 to vector<8x256xf32>
    %182 = arith.select %180, %178, %181 : vector<8x256xi1>, vector<8x256xf32>
    %183 = vector.extract_strided_slice %148 {offsets = [0, 0], sizes = [8, 1], strides = [1, 1]} : vector<8x9xf32> to vector<8x1xf32>
    %184 = vector.broadcast %183 : vector<8x1xf32> to vector<8x256xf32>
    %185 = arith.mulf %184, %182 : vector<8x256xf32>
    %186 = arith.addf %177, %185 : vector<8x256xf32>
    %c16_i32_40 = arith.constant 16 : i32
    %187 = tpu.dynamic_rotate %176 by %c16_i32_40 dim 1 : vector<8x256xf32>, i32 -> vector<8x256xf32>
    %cst_41 = arith.constant 0.000000e+00 : f32
    %188 = vector.shape_cast %18 : vector<1x256xi1> to vector<1x256xi1>
    %189 = vector.broadcast %188 : vector<1x256xi1> to vector<8x256xi1>
    %190 = vector.broadcast %cst_41 : f32 to vector<8x256xf32>
    %191 = arith.select %189, %187, %190 : vector<8x256xi1>, vector<8x256xf32>
    %192 = vector.extract_strided_slice %148 {offsets = [0, 1], sizes = [8, 1], strides = [1, 1]} : vector<8x9xf32> to vector<8x1xf32>
    %193 = vector.broadcast %192 : vector<8x1xf32> to vector<8x256xf32>
    %194 = arith.mulf %193, %191 : vector<8x256xf32>
    %195 = arith.addf %186, %194 : vector<8x256xf32>
    %c15_i32_42 = arith.constant 15 : i32
    %196 = tpu.dynamic_rotate %176 by %c15_i32_42 dim 1 : vector<8x256xf32>, i32 -> vector<8x256xf32>
    %cst_43 = arith.constant 0.000000e+00 : f32
    %197 = vector.shape_cast %26 : vector<1x256xi1> to vector<1x256xi1>
    %198 = vector.broadcast %197 : vector<1x256xi1> to vector<8x256xi1>
    %199 = vector.broadcast %cst_43 : f32 to vector<8x256xf32>
    %200 = arith.select %198, %196, %199 : vector<8x256xi1>, vector<8x256xf32>
    %201 = vector.extract_strided_slice %148 {offsets = [0, 2], sizes = [8, 1], strides = [1, 1]} : vector<8x9xf32> to vector<8x1xf32>
    %202 = vector.broadcast %201 : vector<8x1xf32> to vector<8x256xf32>
    %203 = arith.mulf %202, %200 : vector<8x256xf32>
    %204 = arith.addf %195, %203 : vector<8x256xf32>
    %c1_i32_44 = arith.constant 1 : i32
    %205 = tpu.dynamic_rotate %176 by %c1_i32_44 dim 1 : vector<8x256xf32>, i32 -> vector<8x256xf32>
    %cst_45 = arith.constant 0.000000e+00 : f32
    %206 = vector.shape_cast %22 : vector<1x256xi1> to vector<1x256xi1>
    %207 = vector.broadcast %206 : vector<1x256xi1> to vector<8x256xi1>
    %208 = vector.broadcast %cst_45 : f32 to vector<8x256xf32>
    %209 = arith.select %207, %205, %208 : vector<8x256xi1>, vector<8x256xf32>
    %210 = vector.extract_strided_slice %148 {offsets = [0, 3], sizes = [8, 1], strides = [1, 1]} : vector<8x9xf32> to vector<8x1xf32>
    %211 = vector.broadcast %210 : vector<8x1xf32> to vector<8x256xf32>
    %212 = arith.mulf %211, %209 : vector<8x256xf32>
    %213 = arith.addf %204, %212 : vector<8x256xf32>
    %214 = vector.extract_strided_slice %148 {offsets = [0, 4], sizes = [8, 1], strides = [1, 1]} : vector<8x9xf32> to vector<8x1xf32>
    %215 = vector.broadcast %214 : vector<8x1xf32> to vector<8x256xf32>
    %216 = arith.mulf %215, %176 : vector<8x256xf32>
    %217 = arith.addf %213, %216 : vector<8x256xf32>
    %c255_i32_46 = arith.constant 255 : i32
    %218 = tpu.dynamic_rotate %176 by %c255_i32_46 dim 1 : vector<8x256xf32>, i32 -> vector<8x256xf32>
    %cst_47 = arith.constant 0.000000e+00 : f32
    %219 = vector.shape_cast %24 : vector<1x256xi1> to vector<1x256xi1>
    %220 = vector.broadcast %219 : vector<1x256xi1> to vector<8x256xi1>
    %221 = vector.broadcast %cst_47 : f32 to vector<8x256xf32>
    %222 = arith.select %220, %218, %221 : vector<8x256xi1>, vector<8x256xf32>
    %223 = vector.extract_strided_slice %148 {offsets = [0, 5], sizes = [8, 1], strides = [1, 1]} : vector<8x9xf32> to vector<8x1xf32>
    %224 = vector.broadcast %223 : vector<8x1xf32> to vector<8x256xf32>
    %225 = arith.mulf %224, %222 : vector<8x256xf32>
    %226 = arith.addf %217, %225 : vector<8x256xf32>
    %c241_i32_48 = arith.constant 241 : i32
    %227 = tpu.dynamic_rotate %176 by %c241_i32_48 dim 1 : vector<8x256xf32>, i32 -> vector<8x256xf32>
    %cst_49 = arith.constant 0.000000e+00 : f32
    %228 = vector.shape_cast %27 : vector<1x256xi1> to vector<1x256xi1>
    %229 = vector.broadcast %228 : vector<1x256xi1> to vector<8x256xi1>
    %230 = vector.broadcast %cst_49 : f32 to vector<8x256xf32>
    %231 = arith.select %229, %227, %230 : vector<8x256xi1>, vector<8x256xf32>
    %232 = vector.extract_strided_slice %148 {offsets = [0, 6], sizes = [8, 1], strides = [1, 1]} : vector<8x9xf32> to vector<8x1xf32>
    %233 = vector.broadcast %232 : vector<8x1xf32> to vector<8x256xf32>
    %234 = arith.mulf %233, %231 : vector<8x256xf32>
    %235 = arith.addf %226, %234 : vector<8x256xf32>
    %c240_i32_50 = arith.constant 240 : i32
    %236 = tpu.dynamic_rotate %176 by %c240_i32_50 dim 1 : vector<8x256xf32>, i32 -> vector<8x256xf32>
    %cst_51 = arith.constant 0.000000e+00 : f32
    %237 = vector.shape_cast %20 : vector<1x256xi1> to vector<1x256xi1>
    %238 = vector.broadcast %237 : vector<1x256xi1> to vector<8x256xi1>
    %239 = vector.broadcast %cst_51 : f32 to vector<8x256xf32>
    %240 = arith.select %238, %236, %239 : vector<8x256xi1>, vector<8x256xf32>
    %241 = vector.extract_strided_slice %148 {offsets = [0, 7], sizes = [8, 1], strides = [1, 1]} : vector<8x9xf32> to vector<8x1xf32>
    %242 = vector.broadcast %241 : vector<8x1xf32> to vector<8x256xf32>
    %243 = arith.mulf %242, %240 : vector<8x256xf32>
    %244 = arith.addf %235, %243 : vector<8x256xf32>
    %c239_i32_52 = arith.constant 239 : i32
    %245 = tpu.dynamic_rotate %176 by %c239_i32_52 dim 1 : vector<8x256xf32>, i32 -> vector<8x256xf32>
    %cst_53 = arith.constant 0.000000e+00 : f32
    %246 = vector.shape_cast %28 : vector<1x256xi1> to vector<1x256xi1>
    %247 = vector.broadcast %246 : vector<1x256xi1> to vector<8x256xi1>
    %248 = vector.broadcast %cst_53 : f32 to vector<8x256xf32>
    %249 = arith.select %247, %245, %248 : vector<8x256xi1>, vector<8x256xf32>
    %250 = vector.extract_strided_slice %148 {offsets = [0, 8], sizes = [8, 1], strides = [1, 1]} : vector<8x9xf32> to vector<8x1xf32>
    %251 = vector.broadcast %250 : vector<8x1xf32> to vector<8x256xf32>
    %252 = arith.mulf %251, %249 : vector<8x256xf32>
    %253 = arith.addf %244, %252 : vector<8x256xf32>
    %254 = vector.broadcast %149 : vector<8x1xf32> to vector<8x256xf32>
    %255 = arith.addf %253, %254 : vector<8x256xf32>
    %256 = vector.extract_strided_slice %255 {offsets = [0, 0], sizes = [4, 256], strides = [1, 1]} : vector<8x256xf32> to vector<4x256xf32>
    %257 = vector.extract_strided_slice %255 {offsets = [4, 0], sizes = [4, 256], strides = [1, 1]} : vector<8x256xf32> to vector<4x256xf32>
    %258 = arith.addf %256, %257 : vector<4x256xf32>
    %c0_54 = arith.constant 0 : index
    %c0_55 = arith.constant 0 : index
    %c0_56 = arith.constant 0 : index
    %259 = vector.load %arg10[%c0_54, %c0_55, %c0_56] : memref<1x4x256xf32, #tpu.memory_space<vmem>>, vector<1x4x256xf32>
    %260 = vector.shape_cast %259 : vector<1x4x256xf32> to vector<4x256xf32>
    %261 = vector.shape_cast %258 : vector<4x256xf32> to vector<1x4x256xf32>
    tpu.vector_store %arg10[%c0_54, %c0_55, %c0_56], %261 {strides = array<i32>} : memref<1x4x256xf32, #tpu.memory_space<vmem>>, vector<1x4x256xf32>,
    return
  }
  func.func @transform_0(%arg0: i32) -> (i32, i32, i32) {
    %c0_i32 = arith.constant 0 : i32
    %c0_i32_0 = arith.constant 0 : i32
    %c0_i32_1 = arith.constant 0 : i32
    return %arg0, %c0_i32, %c0_i32_0 : i32, i32, i32
  }
  func.func @transform_1(%arg0: i32) -> (i32, i32) {
    %c0_i32 = arith.constant 0 : i32
    %c0_i32_0 = arith.constant 0 : i32
    %c0_i32_1 = arith.constant 0 : i32
    return %c0_i32, %c0_i32_0 : i32, i32
  }
  func.func @transform_2(%arg0: i32) -> (i32, i32) {
    %c0_i32 = arith.constant 0 : i32
    %c0_i32_0 = arith.constant 0 : i32
    %c0_i32_1 = arith.constant 0 : i32
    return %c0_i32, %c0_i32_0 : i32, i32
  }
  func.func @transform_3(%arg0: i32) -> (i32, i32) {
    %c0_i32 = arith.constant 0 : i32
    %c0_i32_0 = arith.constant 0 : i32
    %c0_i32_1 = arith.constant 0 : i32
    return %c0_i32, %c0_i32_0 : i32, i32
  }
  func.func @transform_4(%arg0: i32) -> (i32, i32) {
    %c0_i32 = arith.constant 0 : i32
    %c0_i32_0 = arith.constant 0 : i32
    %c0_i32_1 = arith.constant 0 : i32
    return %c0_i32, %c0_i32_0 : i32, i32
  }
  func.func @transform_5(%arg0: i32) -> (i32, i32) {
    %c0_i32 = arith.constant 0 : i32
    %c0_i32_0 = arith.constant 0 : i32
    %c0_i32_1 = arith.constant 0 : i32
    return %c0_i32, %c0_i32_0 : i32, i32
  }
  func.func @transform_6(%arg0: i32) -> (i32, i32) {
    %c0_i32 = arith.constant 0 : i32
    %c0_i32_0 = arith.constant 0 : i32
    %c0_i32_1 = arith.constant 0 : i32
    return %c0_i32, %c0_i32_0 : i32, i32
  }
  func.func @transform_7(%arg0: i32) -> (i32, i32) {
    %c0_i32 = arith.constant 0 : i32
    %c0_i32_0 = arith.constant 0 : i32
    %c0_i32_1 = arith.constant 0 : i32
    return %c0_i32, %c0_i32_0 : i32, i32
  }
  func.func @transform_8(%arg0: i32) -> (i32, i32) {
    %c0_i32 = arith.constant 0 : i32
    %c0_i32_0 = arith.constant 0 : i32
    %c0_i32_1 = arith.constant 0 : i32
    return %c0_i32, %c0_i32_0 : i32, i32
  }
  func.func @transform_9(%arg0: i32) -> (i32, i32, i32) {
    %c0_i32 = arith.constant 0 : i32
    %c0_i32_0 = arith.constant 0 : i32
    %c0_i32_1 = arith.constant 0 : i32
    return %arg0, %c0_i32, %c0_i32_0 : i32, i32, i32
  }
}

</mosaic_0001>

<llo_original>
// kernel: belly_block_forward.1
$region0: #{belly_block_forward.1}
  #allocation0 [shape = 'u32[]', space=smem, size = 0x4, offset = 0x4, fixed_abs, tag = 'smem constant byte address 0x4 - core index']
  #allocation1 [shape = 'u32[144,128]{1,0:T(1,128)}', space=vmem, size = 0x12000, scoped, tag = 'internal scratch']
  %s0 = inlined_call_operand.vmem [shape: f32[2,4,256], index: 0, kind: input, shape index: {}]
  %s1 = inlined_call_operand.vmem [shape: f32[8,4], index: 1, kind: input, shape index: {}]
  %s2 = inlined_call_operand.vmem [shape: f32[8,1], index: 2, kind: input, shape index: {}]
  %s3 = inlined_call_operand.vmem [shape: f32[8,9], index: 3, kind: input, shape index: {}]
  %s4 = inlined_call_operand.vmem [shape: f32[8,1], index: 4, kind: input, shape index: {}]
  %s5 = inlined_call_operand.vmem [shape: f32[8,4], index: 5, kind: input, shape index: {}]
  %s6 = inlined_call_operand.vmem [shape: f32[8,1], index: 6, kind: input, shape index: {}]
  %s7 = inlined_call_operand.vmem [shape: f32[8,9], index: 7, kind: input, shape index: {}]
  %s8 = inlined_call_operand.vmem [shape: f32[8,1], index: 8, kind: input, shape index: {}]
  %s9 = inlined_call_operand.vmem [shape: f32[2,4,256], index: 9, kind: output, shape index: {}]
  %s10 = sld [smem:[#allocation0]]
  $region69: #{belly_block_forward.1} parent=0
    _
  %s12 = ssub.s32 1, %s10
  %s13 = scalar_select 0, %s12, %s10
  loop: start=0, step=1, limit=4
  $region2: #{belly_block_forward.1} parent=0 // loop_pre_header
    _
  $region3: #{belly_block_forward.1} parent=0 // loop_header
    %s15 = sphi 0, %s19
    %p16 = scmp.ge.s32.totalorder %s15, 4
    %s25 = sphi 0, %s27
    %s28 = sphi 0, %s25
    %s29 = sphi 0, %s28
    %s45 = sphi 0, %s29
    %s49 = sphi 0, %s49
    %s51 = sphi 0, %s49
    %s52 = sphi 0, %s51
    %s66 = sphi 0, %s52
    %s70 = sphi 0, %s70
    %s72 = sphi 0, %s70
    %s73 = sphi 0, %s72
    %s87 = sphi 0, %s73
    %s91 = sphi 0, %s91
    %s93 = sphi 0, %s91
    %s94 = sphi 0, %s93
    %s108 = sphi 0, %s94
    %s112 = sphi 0, %s112
    %s114 = sphi 0, %s112
    %s115 = sphi 0, %s114
    %s129 = sphi 0, %s115
    %s133 = sphi 0, %s133
    %s135 = sphi 0, %s133
    %s136 = sphi 0, %s135
    %s150 = sphi 0, %s136
    %s154 = sphi 0, %s154
    %s156 = sphi 0, %s154
    %s157 = sphi 0, %s156
    %s171 = sphi 0, %s157
    %s175 = sphi 0, %s175
    %s177 = sphi 0, %s175
    %s178 = sphi 0, %s177
    %s192 = sphi 0, %s178
    %s196 = sphi 0, %s196
    %s198 = sphi 0, %s196
    %s199 = sphi 0, %s198
    %s213 = sphi 0, %s199
    %s219 = sphi 0, %s221
    %s222 = sphi 0, %s219
    %s223 = sphi 0, %s222
    %s239 = sphi 0, %s223
  $region4: #{belly_block_forward.1} parent=0 // loop_header_branch
    %18 = sbr.rel (%p16) target = $region8
  $region5: #{belly_block_forward.1} parent=0 // loop_body
    %s20 = ssub.s32 %s15, 1
    %s21 = ssub.s32 %s15, 2
    %s22 = sadd.s32 %s15, 1
    %s23 = ssub.s32 %s15, %s22
    %p24 = scmp.eq.s32.totalorder %s23, 0
    %s26 = sadd.s32 %s25, 1
    %s27 = scalar_select %p24, %s25, %s26
    %p30 = pneg %p24
    %p31 = scmp.eq.s32.totalorder %s15, 1
    %p32 = por %p30, %p31
    %p33 = scmp.ne.s32.totalorder %s25, %s28
    %p34 = scmp.eq.s32.totalorder %s15, 0
    %p35 = por %p33, %p34
    %p36 = scmp.ne.s32.totalorder %s25, %s28
    %p37 = scmp.eq.s32.totalorder %s20, 1
    %p38 = por %p36, %p37
    %p39 = scmp.ne.s32.totalorder %s28, %s29
    %p40 = scmp.eq.s32.totalorder %s20, 0
    %p41 = por %p39, %p40
    %p42 = scmp.ne.s32.totalorder %s28, %s29
    %p43 = scmp.eq.s32.totalorder %s21, 1
    %p44 = por %p42, %p43
    %p46 = scmp.ne.s32.totalorder %s29, %s45
    %p47 = scmp.eq.s32.totalorder %s21, 0
    %p48 = por %p46, %p47
    %s50 = sadd.s32 %s49, 1
    %p53 = scmp.eq.s32.totalorder %s15, 1
    %p54 = scmp.ne.s32.totalorder %s49, %s51
    %p55 = scmp.eq.s32.totalorder %s15, 0
    %p56 = por %p54, %p55
    %p57 = scmp.ne.s32.totalorder %s49, %s51
    %p58 = scmp.eq.s32.totalorder %s20, 1
    %p59 = por %p57, %p58
    %p60 = scmp.ne.s32.totalorder %s51, %s52
    %p61 = scmp.eq.s32.totalorder %s20, 0
    %p62 = por %p60, %p61
    %p63 = scmp.ne.s32.totalorder %s51, %s52
    %p64 = scmp.eq.s32.totalorder %s21, 1
    %p65 = por %p63, %p64
    %p67 = scmp.ne.s32.totalorder %s52, %s66
    %p68 = scmp.eq.s32.totalorder %s21, 0
    %p69 = por %p67, %p68
    %s71 = sadd.s32 %s70, 1
    %p74 = scmp.eq.s32.totalorder %s15, 1
    %p75 = scmp.ne.s32.totalorder %s70, %s72
    %p76 = scmp.eq.s32.totalorder %s15, 0
    %p77 = por %p75, %p76
    %p78 = scmp.ne.s32.totalorder %s70, %s72
    %p79 = scmp.eq.s32.totalorder %s20, 1
    %p80 = por %p78, %p79
    %p81 = scmp.ne.s32.totalorder %s72, %s73
    %p82 = scmp.eq.s32.totalorder %s20, 0
    %p83 = por %p81, %p82
    %p84 = scmp.ne.s32.totalorder %s72, %s73
    %p85 = scmp.eq.s32.totalorder %s21, 1
    %p86 = por %p84, %p85
    %p88 = scmp.ne.s32.totalorder %s73, %s87
    %p89 = scmp.eq.s32.totalorder %s21, 0
    %p90 = por %p88, %p89
    %s92 = sadd.s32 %s91, 1
    %p95 = scmp.eq.s32.totalorder %s15, 1
    %p96 = scmp.ne.s32.totalorder %s91, %s93
    %p97 = scmp.eq.s32.totalorder %s15, 0
    %p98 = por %p96, %p97
    %p99 = scmp.ne.s32.totalorder %s91, %s93
    %p100 = scmp.eq.s32.totalorder %s20, 1
    %p101 = por %p99, %p100
    %p102 = scmp.ne.s32.totalorder %s93, %s94
    %p103 = scmp.eq.s32.totalorder %s20, 0
    %p104 = por %p102, %p103
    %p105 = scmp.ne.s32.totalorder %s93, %s94
    %p106 = scmp.eq.s32.totalorder %s21, 1
    %p107 = por %p105, %p106
    %p109 = scmp.ne.s32.totalorder %s94, %s108
    %p110 = scmp.eq.s32.totalorder %s21, 0
    %p111 = por %p109, %p110
    %s113 = sadd.s32 %s112, 1
    %p116 = scmp.eq.s32.totalorder %s15, 1
    %p117 = scmp.ne.s32.totalorder %s112, %s114
    %p118 = scmp.eq.s32.totalorder %s15, 0
    %p119 = por %p117, %p118
    %p120 = scmp.ne.s32.totalorder %s112, %s114
    %p121 = scmp.eq.s32.totalorder %s20, 1
    %p122 = por %p120, %p121
    %p123 = scmp.ne.s32.totalorder %s114, %s115
    %p124 = scmp.eq.s32.totalorder %s20, 0
    %p125 = por %p123, %p124
    %p126 = scmp.ne.s32.totalorder %s114, %s115
    %p127 = scmp.eq.s32.totalorder %s21, 1
    %p128 = por %p126, %p127
    %p130 = scmp.ne.s32.totalorder %s115, %s129
    %p131 = scmp.eq.s32.totalorder %s21, 0
    %p132 = por %p130, %p131
    %s134 = sadd.s32 %s133, 1
    %p137 = scmp.eq.s32.totalorder %s15, 1
    %p138 = scmp.ne.s32.totalorder %s133, %s135
    %p139 = scmp.eq.s32.totalorder %s15, 0
    %p140 = por %p138, %p139
    %p141 = scmp.ne.s32.totalorder %s133, %s135
    %p142 = scmp.eq.s32.totalorder %s20, 1
    %p143 = por %p141, %p142
    %p144 = scmp.ne.s32.totalorder %s135, %s136
    %p145 = scmp.eq.s32.totalorder %s20, 0
    %p146 = por %p144, %p145
    %p147 = scmp.ne.s32.totalorder %s135, %s136
    %p148 = scmp.eq.s32.totalorder %s21, 1
    %p149 = por %p147, %p148
    %p151 = scmp.ne.s32.totalorder %s136, %s150
    %p152 = scmp.eq.s32.totalorder %s21, 0
    %p153 = por %p151, %p152
    %s155 = sadd.s32 %s154, 1
    %p158 = scmp.eq.s32.totalorder %s15, 1
    %p159 = scmp.ne.s32.totalorder %s154, %s156
    %p160 = scmp.eq.s32.totalorder %s15, 0
    %p161 = por %p159, %p160
    %p162 = scmp.ne.s32.totalorder %s154, %s156
    %p163 = scmp.eq.s32.totalorder %s20, 1
    %p164 = por %p162, %p163
    %p165 = scmp.ne.s32.totalorder %s156, %s157
    %p166 = scmp.eq.s32.totalorder %s20, 0
    %p167 = por %p165, %p166
    %p168 = scmp.ne.s32.totalorder %s156, %s157
    %p169 = scmp.eq.s32.totalorder %s21, 1
    %p170 = por %p168, %p169
    %p172 = scmp.ne.s32.totalorder %s157, %s171
    %p173 = scmp.eq.s32.totalorder %s21, 0
    %p174 = por %p172, %p173
    %s176 = sadd.s32 %s175, 1
    %p179 = scmp.eq.s32.totalorder %s15, 1
    %p180 = scmp.ne.s32.totalorder %s175, %s177
    %p181 = scmp.eq.s32.totalorder %s15, 0
    %p182 = por %p180, %p181
    %p183 = scmp.ne.s32.totalorder %s175, %s177
    %p184 = scmp.eq.s32.totalorder %s20, 1
    %p185 = por %p183, %p184
    %p186 = scmp.ne.s32.totalorder %s177, %s178
    %p187 = scmp.eq.s32.totalorder %s20, 0
    %p188 = por %p186, %p187
    %p189 = scmp.ne.s32.totalorder %s177, %s178
    %p190 = scmp.eq.s32.totalorder %s21, 1
    %p191 = por %p189, %p190
    %p193 = scmp.ne.s32.totalorder %s178, %s192
    %p194 = scmp.eq.s32.totalorder %s21, 0
    %p195 = por %p193, %p194
    %s197 = sadd.s32 %s196, 1
    %p200 = scmp.eq.s32.totalorder %s15, 1
    %p201 = scmp.ne.s32.totalorder %s196, %s198
    %p202 = scmp.eq.s32.totalorder %s15, 0
    %p203 = por %p201, %p202
    %p204 = scmp.ne.s32.totalorder %s196, %s198
    %p205 = scmp.eq.s32.totalorder %s20, 1
    %p206 = por %p204, %p205
    %p207 = scmp.ne.s32.totalorder %s198, %s199
    %p208 = scmp.eq.s32.totalorder %s20, 0
    %p209 = por %p207, %p208
    %p210 = scmp.ne.s32.totalorder %s198, %s199
    %p211 = scmp.eq.s32.totalorder %s21, 1
    %p212 = por %p210, %p211
    %p214 = scmp.ne.s32.totalorder %s199, %s213
    %p215 = scmp.eq.s32.totalorder %s21, 0
    %p216 = por %p214, %p215
    %s217 = ssub.s32 %s15, %s22
    %p218 = scmp.eq.s32.totalorder %s217, 0
    %s220 = sadd.s32 %s219, 1
    %s221 = scalar_select %p218, %s219, %s220
    %p224 = pneg %p218
    %p225 = scmp.eq.s32.totalorder %s15, 1
    %p226 = por %p224, %p225
    %p227 = scmp.ne.s32.totalorder %s219, %s222
    %p228 = scmp.eq.s32.totalorder %s15, 0
    %p229 = por %p227, %p228
    %p230 = scmp.ne.s32.totalorder %s219, %s222
    %p231 = scmp.eq.s32.totalorder %s20, 1
    %p232 = por %p230, %p231
    %p233 = scmp.ne.s32.totalorder %s222, %s223
    %p234 = scmp.eq.s32.totalorder %s20, 0
    %p235 = por %p233, %p234
    %p236 = scmp.ne.s32.totalorder %s222, %s223
    %p237 = scmp.eq.s32.totalorder %s21, 1
    %p238 = por %p236, %p237
    %p240 = scmp.ne.s32.totalorder %s223, %s239
    %p241 = scmp.eq.s32.totalorder %s21, 0
    %p242 = por %p240, %p241
    %p243 = scmp.le.s32.totalorder 1, %s15
    %p244 = scmp.lt.s32.totalorder %s15, 3
    %p245 = pnand %p243, %p244
    %p246 = pneg %p245
    // Predicated region
    $region9: #{belly_block_forward.1} parent=5 // pred_check
      _
    $region10: #{belly_block_forward.1} parent=5 // pred_check_branch
      %248 = sbr.rel (%p245) target = $region12
    $region11: #{belly_block_forward.1} parent=5 // pred_region
      %s249 = ssub.s32 %s15, 1
      // Predicated region
      $region13: #{belly_block_forward.1} parent=11 // pred_check
        %p250 = pneg %p62
      $region14: #{belly_block_forward.1} parent=11 // pred_check_branch
        %252 = sbr.rel (%p250) target = $region16
      $region15: #{belly_block_forward.1} parent=11 // pred_region
        _
      $region16: #{belly_block_forward.1} parent=11 // pred_fallthru
        _
      // Predicated region
      $region17: #{belly_block_forward.1} parent=11 // pred_check
        %p253 = pneg %p83
      $region18: #{belly_block_forward.1} parent=11 // pred_check_branch
        %255 = sbr.rel (%p253) target = $region20
      $region19: #{belly_block_forward.1} parent=11 // pred_region
        _
      $region20: #{belly_block_forward.1} parent=11 // pred_fallthru
        _
      // Predicated region
      $region21: #{belly_block_forward.1} parent=11 // pred_check
        %p256 = pneg %p104
      $region22: #{belly_block_forward.1} parent=11 // pred_check_branch
        %258 = sbr.rel (%p256) target = $region24
      $region23: #{belly_block_forward.1} parent=11 // pred_region
        _
      $region24: #{belly_block_forward.1} parent=11 // pred_fallthru
        _
      // Predicated region
      $region25: #{belly_block_forward.1} parent=11 // pred_check
        %p259 = pneg %p125
      $region26: #{belly_block_forward.1} parent=11 // pred_check_branch
        %261 = sbr.rel (%p259) target = $region28
      $region27: #{belly_block_forward.1} parent=11 // pred_region
        _
      $region28: #{belly_block_forward.1} parent=11 // pred_fallthru
        _
      // Predicated region
      $region29: #{belly_block_forward.1} parent=11 // pred_check
        %p262 = pneg %p146
      $region30: #{belly_block_forward.1} parent=11 // pred_check_branch
        %264 = sbr.rel (%p262) target = $region32
      $region31: #{belly_block_forward.1} parent=11 // pred_region
        _
      $region32: #{belly_block_forward.1} parent=11 // pred_fallthru
        _
      // Predicated region
      $region33: #{belly_block_forward.1} parent=11 // pred_check
        %p265 = pneg %p167
      $region34: #{belly_block_forward.1} parent=11 // pred_check_branch
        %267 = sbr.rel (%p265) target = $region36
      $region35: #{belly_block_forward.1} parent=11 // pred_region
        _
      $region36: #{belly_block_forward.1} parent=11 // pred_fallthru
        _
      // Predicated region
      $region37: #{belly_block_forward.1} parent=11 // pred_check
        %p268 = pneg %p188
      $region38: #{belly_block_forward.1} parent=11 // pred_check_branch
        %270 = sbr.rel (%p268) target = $region40
      $region39: #{belly_block_forward.1} parent=11 // pred_region
        _
      $region40: #{belly_block_forward.1} parent=11 // pred_fallthru
        _
      // Predicated region
      $region41: #{belly_block_forward.1} parent=11 // pred_check
        %p271 = pneg %p209
      $region42: #{belly_block_forward.1} parent=11 // pred_check_branch
        %273 = sbr.rel (%p271) target = $region44
      $region43: #{belly_block_forward.1} parent=11 // pred_region
        _
      $region44: #{belly_block_forward.1} parent=11 // pred_fallthru
        _
    $region12: #{belly_block_forward.1} parent=5 // pred_fallthru
      _
    %p274 = scmp.lt.s32.totalorder %s15, 2
    // Predicated region
    $region45: #{belly_block_forward.1} parent=5 // pred_check
      %p275 = pneg %p274
    $region46: #{belly_block_forward.1} parent=5 // pred_check_branch
      %277 = sbr.rel (%p275) target = $region48
    $region47: #{belly_block_forward.1} parent=5 // pred_region
      // Predicated region
      $region49: #{belly_block_forward.1} parent=47 // pred_check
        %p278 = pneg %p35
      $region50: #{belly_block_forward.1} parent=47 // pred_check_branch
        %280 = sbr.rel (%p278) target = $region52
      $region51: #{belly_block_forward.1} parent=47 // pred_region
        %p281 = scmp.lt.s32.totalorder %s15, 1
        %s282 = scalar_select %p281, %s15, 1
        %s283 = smul.addr %s282, 2
        %s284 = smul.addr %s283, 4
        %s285 = scalar_lea.vmem %s0, %s284
      $region52: #{belly_block_forward.1} parent=47 // pred_fallthru
        _
    $region48: #{belly_block_forward.1} parent=5 // pred_fallthru
      _
    %p286 = scmp.le.s32.totalorder 1, %s15
    %p287 = scmp.lt.s32.totalorder %s15, 3
    %p288 = pnand %p286, %p287
    %p289 = pneg %p288
    // Predicated region
    $region53: #{belly_block_forward.1} parent=5 // pred_check
      _
    $region54: #{belly_block_forward.1} parent=5 // pred_check_branch
      %291 = sbr.rel (%p288) target = $region56
    $region55: #{belly_block_forward.1} parent=5 // pred_region
      %s292 = ssub.s32 %s15, 1
      %p293 = scmp.lt.s32.totalorder %s20, 1
      %s294 = scalar_select %p293, %s20, 1
      %s295 = smul.addr %s294, 2
      %s296 = smul.addr %s295, 4
      %s297 = scalar_lea.vmem %s0, %s296
      %p298 = pneg %p41
      %p299 = pneg %p38
      %p300 = pneg %p62
      %p301 = pneg %p59
      %p302 = pneg %p83
      %p303 = pneg %p80
      %p304 = pneg %p104
      %p305 = pneg %p101
      %p306 = pneg %p125
      %p307 = pneg %p122
      %p308 = pneg %p146
      %p309 = pneg %p143
      %p310 = pneg %p167
      %p311 = pneg %p164
      %p312 = pneg %p188
      %p313 = pneg %p185
      %p314 = pneg %p209
      %p315 = pneg %p206
      %p316 = pneg %p235
      %p317 = pneg %p232
      %p318 = scmp.lt.s32.totalorder %s20, 1
      %s319 = scalar_select %p318, %s20, 1
      %s320 = smul.addr %s319, 2
      %s321 = smul.addr %s320, 4
      %s322 = scalar_lea.vmem %s9, %s321
      %p323 = scmp.lt.s32.totalorder %s20, 1
      %s324 = scalar_select %p323, %s20, 1
      %s325 = smul.addr %s324, 2
      %s326 = smul.addr %s325, 4
      %s327 = scalar_lea.vmem %s0, %s326
      %p328 = scmp.lt.s32.totalorder %s20, 1
      %s329 = scalar_select %p328, %s20, 1
      %s330 = smul.addr %s329, 2
      %s331 = smul.addr %s330, 4
      %s332 = scalar_lea.vmem %s9, %s331
      %v333 = vlaneseq
      %v334 = vand.u32 %v333, 127
      %v335 = vadd.s32 %v334, 128
      %vm336 = vcmp.lt.s32.totalorder %v334, 0
      %v337 = vsub.s32 0, %v334
      %v338 = vsel %vm336, %v337, %v334
      %v339 = vshrl.u32 %v338, 4
      %v340 = vand.u32 %v338, 15
      %v341 = vsub.s32 0, %v340
      %v342 = vsel %vm336, %v341, %v340
      %vm343 = vcmp.lt.s32.totalorder %v335, 0
      %v344 = vsub.s32 0, %v335
      %v345 = vsel %vm343, %v344, %v335
      %v346 = vshrl.u32 %v345, 4
      %v347 = vand.u32 %v345, 15
      %v348 = vsub.s32 0, %v347
      %v349 = vsel %vm343, %v348, %v347
      %vm350 = vcmp.ne.s32.totalorder %v342, 0
      %vm351 = vcmp.ne.s32.totalorder %v349, 0
      %vm352 = vcmp.lt.s32.totalorder %v342, 0
      %vm353 = vcmp.lt.s32.totalorder %v349, 0
      %vm354 = vmand %vm352, %vm350
      %vm355 = vmand %vm353, %vm351
      %v356 = vadd.s32 %v342, 16
      %v357 = vadd.s32 %v349, 16
      %v358 = vsel %vm354, %v356, %v342
      %v359 = vsel %vm355, %v357, %v349
      %vm360 = vcmp.ge.s32.totalorder %v334, 16
      %vm361 = vcmp.ge.s32.totalorder %v335, 16
      %vm362 = vcmp.lt.s32.totalorder %v334, 240
      %vm363 = vcmp.lt.s32.totalorder %v335, 240
      %vm364 = vcmp.ge.s32.totalorder %v358, 1
      %vm365 = vcmp.ge.s32.totalorder %v359, 1
      %vm366 = vcmp.le.s32.totalorder %v358, 14
      %vm367 = vcmp.le.s32.totalorder %v359, 14
      %vm368 = vmand %vm360, %vm364
      %vm369 = vmand %vm361, %vm365
      %vm370 = vmand %vm360, %vm366
      %vm371 = vmand %vm361, %vm367
      %vm372 = vmand %vm362, %vm364
      %vm373 = vmand %vm363, %vm365
      %vm374 = vmand %vm362, %vm366
      %vm375 = vmand %vm363, %vm367
      %v376 = vld [vmem:[%s327] sm:$0xff]
      %v377 = vld [vmem:[%s1] sm:$0xff]
      %v378 = vld [vmem:[%s2] sm:$0xff]
      %v379 = vld [vmem:[%s3] sm:$0xff]
      %v380 = vld [vmem:[%s4] sm:$0xff]
      %382 = vset.pattern.permute.xlu0 0
      %383 = vperm.xlu0 %382, %v377
      %v384 = vpop.permute.xlu0 %383
      %v387 = vlaneseq
      %v388 = vshrl.u32 %v387, 7
      %v389 = vsub.s32 0, %v388
      %v390 = vrot.slane %v376, %v389
      %v391 = vlaneseq
      %v392 = vshrl.u32 %v391, 7
      %v393 = vsub.s32 4, %v392
      %v394 = vrot.slane %v376, %v393
      %v397 = vlaneseq
      %v398 = vshrl.u32 %v397, 7
      %v399 = vsub.s32 0, %v398
      %v400 = vrot.slane %v390, %v399
      %v401 = vlaneseq
      %v402 = vshrl.u32 %v401, 7
      %v403 = vsub.s32 0, %v402
      %v404 = vrot.slane %v394, %v403
      %v405 = vmul.f32 %v384, %v400
      %v406 = vmul.f32 %v384, %v404
      %v407 = vadd.f32 %v405, 0.0
      %v408 = vadd.f32 %v406, 0.0
      %409 = vset.pattern.permute.xlu0 1
      %410 = vperm.xlu0 %409, %v377
      %v411 = vpop.permute.xlu0 %410
      %v413 = vlaneseq
      %v414 = vshrl.u32 %v413, 7
      %v415 = vsub.s32 1, %v414
      %v416 = vrot.slane %v376, %v415
      %v417 = vlaneseq
      %v418 = vshrl.u32 %v417, 7
      %v419 = vsub.s32 5, %v418
      %v420 = vrot.slane %v376, %v419
      %v423 = vlaneseq
      %v424 = vshrl.u32 %v423, 7
      %v425 = vsub.s32 1, %v424
      %v426 = vrot.slane %v416, %v425
      %v427 = vlaneseq
      %v428 = vshrl.u32 %v427, 7
      %v429 = vsub.s32 1, %v428
      %v430 = vrot.slane %v420, %v429
      %v431 = vmul.f32 %v411, %v426
      %v432 = vmul.f32 %v411, %v430
      %v433 = vadd.f32 %v407, %v431
      %v434 = vadd.f32 %v408, %v432
      %435 = vset.pattern.permute.xlu0 2
      %436 = vperm.xlu0 %435, %v377
      %v437 = vpop.permute.xlu0 %436
      %v439 = vlaneseq
      %v440 = vshrl.u32 %v439, 7
      %v441 = vsub.s32 2, %v440
      %v442 = vrot.slane %v376, %v441
      %v443 = vlaneseq
      %v444 = vshrl.u32 %v443, 7
      %v445 = vsub.s32 6, %v444
      %v446 = vrot.slane %v376, %v445
      %v449 = vlaneseq
      %v450 = vshrl.u32 %v449, 7
      %v451 = vsub.s32 2, %v450
      %v452 = vrot.slane %v442, %v451
      %v453 = vlaneseq
      %v454 = vshrl.u32 %v453, 7
      %v455 = vsub.s32 2, %v454
      %v456 = vrot.slane %v446, %v455
      %v457 = vmul.f32 %v437, %v452
      %v458 = vmul.f32 %v437, %v456
      %v459 = vadd.f32 %v433, %v457
      %v460 = vadd.f32 %v434, %v458
      %461 = vset.pattern.permute.xlu0 3
      %462 = vperm.xlu0 %461, %v377
      %v463 = vpop.permute.xlu0 %462
      %v465 = vlaneseq
      %v466 = vshrl.u32 %v465, 7
      %v467 = vsub.s32 3, %v466
      %v468 = vrot.slane %v376, %v467
      %v469 = vlaneseq
      %v470 = vshrl.u32 %v469, 7
      %v471 = vsub.s32 7, %v470
      %v472 = vrot.slane %v376, %v471
      %v475 = vlaneseq
      %v476 = vshrl.u32 %v475, 7
      %v477 = vsub.s32 3, %v476
      %v478 = vrot.slane %v468, %v477
      %v479 = vlaneseq
      %v480 = vshrl.u32 %v479, 7
      %v481 = vsub.s32 3, %v480
      %v482 = vrot.slane %v472, %v481
      %v483 = vmul.f32 %v463, %v478
      %v484 = vmul.f32 %v463, %v482
      %v485 = vadd.f32 %v459, %v483
      %v486 = vadd.f32 %v460, %v484
      %488 = vset.pattern.permute.xlu0 0
      %489 = vperm.xlu0 %488, %v378
      %v490 = vpop.permute.xlu0 %489
      %v492 = vadd.f32 %v485, %v490
      %v493 = vadd.f32 %v486, %v490
      %494 = vrot.lane.b32.xlu0 %v492, 17
      %v495 = vpop.permute.xlu0 %494
      %496 = vrot.lane.b32.xlu0 %v493, 17
      %v497 = vpop.permute.xlu0 %496
      %vm498 = vcmp.lt.s32.totalorder %v334, 17
      %v499 = vsel %vm498, %v495, %v497
      %v500 = vsel %vm498, %v497, %v495
      %v501 = vsel %vm368, 1, 0
      %v502 = vsel %vm369, 1, 0
      %vm503 = vcmp.eq.s32.totalorder %v501, 1
      %vm504 = vcmp.eq.s32.totalorder %v502, 1
      %v505 = vsel %vm503, %v500, 0.0
      %v506 = vsel %vm504, %v499, 0.0
      %508 = vset.pattern.permute.xlu0 0
      %509 = vperm.xlu0 %508, %v379
      %v510 = vpop.permute.xlu0 %509
      %v512 = vmul.f32 %v510, %v505
      %v513 = vmul.f32 %v510, %v506
      %v514 = vadd.f32 %v512, 0.0
      %v515 = vadd.f32 %v513, 0.0
      %516 = vrot.lane.b32.xlu0 %v492, 16
      %v517 = vpop.permute.xlu0 %516
      %518 = vrot.lane.b32.xlu0 %v493, 16
      %v519 = vpop.permute.xlu0 %518
      %vm520 = vcmp.lt.s32.totalorder %v334, 16
      %v521 = vsel %vm520, %v517, %v519
      %v522 = vsel %vm520, %v519, %v517
      %v523 = vsel %vm360, 1, 0
      %v524 = vsel %vm361, 1, 0
      %vm525 = vcmp.eq.s32.totalorder %v523, 1
      %vm526 = vcmp.eq.s32.totalorder %v524, 1
      %v527 = vsel %vm525, %v522, 0.0
      %v528 = vsel %vm526, %v521, 0.0
      %529 = vset.pattern.permute.xlu0 1
      %530 = vperm.xlu0 %529, %v379
      %v531 = vpop.permute.xlu0 %530
      %v533 = vmul.f32 %v531, %v527
      %v534 = vmul.f32 %v531, %v528
      %v535 = vadd.f32 %v514, %v533
      %v536 = vadd.f32 %v515, %v534
      %537 = vrot.lane.b32.xlu0 %v492, 15
      %v538 = vpop.permute.xlu0 %537
      %539 = vrot.lane.b32.xlu0 %v493, 15
      %v540 = vpop.permute.xlu0 %539
      %vm541 = vcmp.lt.s32.totalorder %v334, 15
      %v542 = vsel %vm541, %v538, %v540
      %v543 = vsel %vm541, %v540, %v538
      %v544 = vsel %vm370, 1, 0
      %v545 = vsel %vm371, 1, 0
      %vm546 = vcmp.eq.s32.totalorder %v544, 1
      %vm547 = vcmp.eq.s32.totalorder %v545, 1
      %v548 = vsel %vm546, %v543, 0.0
      %v549 = vsel %vm547, %v542, 0.0
      %550 = vset.pattern.permute.xlu0 2
      %551 = vperm.xlu0 %550, %v379
      %v552 = vpop.permute.xlu0 %551
      %v554 = vmul.f32 %v552, %v548
      %v555 = vmul.f32 %v552, %v549
      %v556 = vadd.f32 %v535, %v554
      %v557 = vadd.f32 %v536, %v555
      %558 = vrot.lane.b32.xlu0 %v492, 1
      %v559 = vpop.permute.xlu0 %558
      %560 = vrot.lane.b32.xlu0 %v493, 1
      %v561 = vpop.permute.xlu0 %560
      %vm562 = vcmp.lt.s32.totalorder %v334, 1
      %v563 = vsel %vm562, %v559, %v561
      %v564 = vsel %vm562, %v561, %v559
      %v565 = vsel %vm364, 1, 0
      %v566 = vsel %vm365, 1, 0
      %vm567 = vcmp.eq.s32.totalorder %v565, 1
      %vm568 = vcmp.eq.s32.totalorder %v566, 1
      %v569 = vsel %vm567, %v564, 0.0
      %v570 = vsel %vm568, %v563, 0.0
      %571 = vset.pattern.permute.xlu0 3
      %572 = vperm.xlu0 %571, %v379
      %v573 = vpop.permute.xlu0 %572
      %v575 = vmul.f32 %v573, %v569
      %v576 = vmul.f32 %v573, %v570
      %v577 = vadd.f32 %v556, %v575
      %v578 = vadd.f32 %v557, %v576
      %579 = vset.pattern.permute.xlu0 4
      %580 = vperm.xlu0 %579, %v379
      %v581 = vpop.permute.xlu0 %580
      %v583 = vmul.f32 %v581, %v492
      %v584 = vmul.f32 %v581, %v493
      %v585 = vadd.f32 %v577, %v583
      %v586 = vadd.f32 %v578, %v584
      %587 = vrot.lane.b32.xlu0 %v492, 127
      %v588 = vpop.permute.xlu0 %587
      %589 = vrot.lane.b32.xlu0 %v493, 127
      %v590 = vpop.permute.xlu0 %589
      %vm591 = vcmp.lt.s32.totalorder %v334, 127
      %v592 = vsel %vm591, %v588, %v590
      %v593 = vsel %vm591, %v590, %v588
      %v594 = vsel %vm366, 1, 0
      %v595 = vsel %vm367, 1, 0
      %vm596 = vcmp.eq.s32.totalorder %v594, 1
      %vm597 = vcmp.eq.s32.totalorder %v595, 1
      %v598 = vsel %vm596, %v592, 0.0
      %v599 = vsel %vm597, %v593, 0.0
      %600 = vset.pattern.permute.xlu0 5
      %601 = vperm.xlu0 %600, %v379
      %v602 = vpop.permute.xlu0 %601
      %v604 = vmul.f32 %v602, %v598
      %v605 = vmul.f32 %v602, %v599
      %v606 = vadd.f32 %v585, %v604
      %v607 = vadd.f32 %v586, %v605
      %608 = vrot.lane.b32.xlu0 %v492, 113
      %v609 = vpop.permute.xlu0 %608
      %610 = vrot.lane.b32.xlu0 %v493, 113
      %v611 = vpop.permute.xlu0 %610
      %vm612 = vcmp.lt.s32.totalorder %v334, 113
      %v613 = vsel %vm612, %v609, %v611
      %v614 = vsel %vm612, %v611, %v609
      %v615 = vsel %vm372, 1, 0
      %v616 = vsel %vm373, 1, 0
      %vm617 = vcmp.eq.s32.totalorder %v615, 1
      %vm618 = vcmp.eq.s32.totalorder %v616, 1
      %v619 = vsel %vm617, %v613, 0.0
      %v620 = vsel %vm618, %v614, 0.0
      %621 = vset.pattern.permute.xlu0 6
      %622 = vperm.xlu0 %621, %v379
      %v623 = vpop.permute.xlu0 %622
      %v625 = vmul.f32 %v623, %v619
      %v626 = vmul.f32 %v623, %v620
      %v627 = vadd.f32 %v606, %v625
      %v628 = vadd.f32 %v607, %v626
      %629 = vrot.lane.b32.xlu0 %v492, 112
      %v630 = vpop.permute.xlu0 %629
      %631 = vrot.lane.b32.xlu0 %v493, 112
      %v632 = vpop.permute.xlu0 %631
      %vm633 = vcmp.lt.s32.totalorder %v334, 112
      %v634 = vsel %vm633, %v630, %v632
      %v635 = vsel %vm633, %v632, %v630
      %v636 = vsel %vm362, 1, 0
      %v637 = vsel %vm363, 1, 0
      %vm638 = vcmp.eq.s32.totalorder %v636, 1
      %vm639 = vcmp.eq.s32.totalorder %v637, 1
      %v640 = vsel %vm638, %v634, 0.0
      %v641 = vsel %vm639, %v635, 0.0
      %642 = vset.pattern.permute.xlu0 7
      %643 = vperm.xlu0 %642, %v379
      %v644 = vpop.permute.xlu0 %643
      %v646 = vmul.f32 %v644, %v640
      %v647 = vmul.f32 %v644, %v641
      %v648 = vadd.f32 %v627, %v646
      %v649 = vadd.f32 %v628, %v647
      %650 = vrot.lane.b32.xlu0 %v492, 111
      %v651 = vpop.permute.xlu0 %650
      %652 = vrot.lane.b32.xlu0 %v493, 111
      %v653 = vpop.permute.xlu0 %652
      %vm654 = vcmp.lt.s32.totalorder %v334, 111
      %v655 = vsel %vm654, %v651, %v653
      %v656 = vsel %vm654, %v653, %v651
      %v657 = vsel %vm374, 1, 0
      %v658 = vsel %vm375, 1, 0
      %vm659 = vcmp.eq.s32.totalorder %v657, 1
      %vm660 = vcmp.eq.s32.totalorder %v658, 1
      %v661 = vsel %vm659, %v655, 0.0
      %v662 = vsel %vm660, %v656, 0.0
      %663 = vset.pattern.permute.xlu0 8
      %664 = vperm.xlu0 %663, %v379
      %v665 = vpop.permute.xlu0 %664
      %v667 = vmul.f32 %v665, %v661
      %v668 = vmul.f32 %v665, %v662
      %v669 = vadd.f32 %v648, %v667
      %v670 = vadd.f32 %v649, %v668
      %672 = vset.pattern.permute.xlu0 0
      %673 = vperm.xlu0 %672, %v380
      %v674 = vpop.permute.xlu0 %673
      %v676 = vadd.f32 %v669, %v674
      %v677 = vadd.f32 %v670, %v674
      %v680 = vrot.slane %v676, 4
      %v681 = vrot.slane %v677, 4
      %v684 = vadd.f32 %v676, %v680
      %v685 = vadd.f32 %v677, %v681
      %v686 = vmax.f32 %v684, 0.0
      %v687 = vmax.f32 %v685, 0.0
      %v688 = vld [vmem:[%s5] sm:$0xff]
      %v689 = vld [vmem:[%s6] sm:$0xff]
      %v690 = vld [vmem:[%s7] sm:$0xff]
      %v691 = vld [vmem:[%s8] sm:$0xff]
      %693 = vset.pattern.permute.xlu0 0
      %694 = vperm.xlu0 %693, %v688
      %v695 = vpop.permute.xlu0 %694
      %v697 = vlaneseq
      %v698 = vshrl.u32 %v697, 7
      %v699 = vsub.s32 0, %v698
      %v700 = vrot.slane %v686, %v699
      %v701 = vlaneseq
      %v702 = vshrl.u32 %v701, 7
      %v703 = vsub.s32 0, %v702
      %v704 = vrot.slane %v687, %v703
      %v705 = vmul.f32 %v695, %v700
      %v706 = vmul.f32 %v695, %v704
      %v707 = vadd.f32 %v705, 0.0
      %v708 = vadd.f32 %v706, 0.0
      %709 = vset.pattern.permute.xlu0 1
      %710 = vperm.xlu0 %709, %v688
      %v711 = vpop.permute.xlu0 %710
      %v713 = vlaneseq
      %v714 = vshrl.u32 %v713, 7
      %v715 = vsub.s32 1, %v714
      %v716 = vrot.slane %v686, %v715
      %v717 = vlaneseq
      %v718 = vshrl.u32 %v717, 7
      %v719 = vsub.s32 1, %v718
      %v720 = vrot.slane %v687, %v719
      %v721 = vmul.f32 %v711, %v716
      %v722 = vmul.f32 %v711, %v720
      %v723 = vadd.f32 %v707, %v721
      %v724 = vadd.f32 %v708, %v722
      %725 = vset.pattern.permute.xlu0 2
      %726 = vperm.xlu0 %725, %v688
      %v727 = vpop.permute.xlu0 %726
      %v729 = vlaneseq
      %v730 = vshrl.u32 %v729, 7
      %v731 = vsub.s32 2, %v730
      %v732 = vrot.slane %v686, %v731
      %v733 = vlaneseq
      %v734 = vshrl.u32 %v733, 7
      %v735 = vsub.s32 2, %v734
      %v736 = vrot.slane %v687, %v735
      %v737 = vmul.f32 %v727, %v732
      %v738 = vmul.f32 %v727, %v736
      %v739 = vadd.f32 %v723, %v737
      %v740 = vadd.f32 %v724, %v738
      %741 = vset.pattern.permute.xlu0 3
      %742 = vperm.xlu0 %741, %v688
      %v743 = vpop.permute.xlu0 %742
      %v745 = vlaneseq
      %v746 = vshrl.u32 %v745, 7
      %v747 = vsub.s32 3, %v746
      %v748 = vrot.slane %v686, %v747
      %v749 = vlaneseq
      %v750 = vshrl.u32 %v749, 7
      %v751 = vsub.s32 3, %v750
      %v752 = vrot.slane %v687, %v751
      %v753 = vmul.f32 %v743, %v748
      %v754 = vmul.f32 %v743, %v752
      %v755 = vadd.f32 %v739, %v753
      %v756 = vadd.f32 %v740, %v754
      %758 = vset.pattern.permute.xlu0 0
      %759 = vperm.xlu0 %758, %v689
      %v760 = vpop.permute.xlu0 %759
      %v762 = vadd.f32 %v755, %v760
      %v763 = vadd.f32 %v756, %v760
      %764 = vrot.lane.b32.xlu0 %v762, 17
      %v765 = vpop.permute.xlu0 %764
      %766 = vrot.lane.b32.xlu0 %v763, 17
      %v767 = vpop.permute.xlu0 %766
      %v768 = vsel %vm498, %v765, %v767
      %v769 = vsel %vm498, %v767, %v765
      %v770 = vsel %vm503, %v769, 0.0
      %v771 = vsel %vm504, %v768, 0.0
      %773 = vset.pattern.permute.xlu0 0
      %774 = vperm.xlu0 %773, %v690
      %v775 = vpop.permute.xlu0 %774
      %v777 = vmul.f32 %v775, %v770
      %v778 = vmul.f32 %v775, %v771
      %v779 = vadd.f32 %v777, 0.0
      %v780 = vadd.f32 %v778, 0.0
      %781 = vrot.lane.b32.xlu0 %v762, 16
      %v782 = vpop.permute.xlu0 %781
      %783 = vrot.lane.b32.xlu0 %v763, 16
      %v784 = vpop.permute.xlu0 %783
      %v785 = vsel %vm520, %v782, %v784
      %v786 = vsel %vm520, %v784, %v782
      %v787 = vsel %vm525, %v786, 0.0
      %v788 = vsel %vm526, %v785, 0.0
      %789 = vset.pattern.permute.xlu0 1
      %790 = vperm.xlu0 %789, %v690
      %v791 = vpop.permute.xlu0 %790
      %v793 = vmul.f32 %v791, %v787
      %v794 = vmul.f32 %v791, %v788
      %v795 = vadd.f32 %v779, %v793
      %v796 = vadd.f32 %v780, %v794
      %797 = vrot.lane.b32.xlu0 %v762, 15
      %v798 = vpop.permute.xlu0 %797
      %799 = vrot.lane.b32.xlu0 %v763, 15
      %v800 = vpop.permute.xlu0 %799
      %v801 = vsel %vm541, %v798, %v800
      %v802 = vsel %vm541, %v800, %v798
      %v803 = vsel %vm546, %v802, 0.0
      %v804 = vsel %vm547, %v801, 0.0
      %805 = vset.pattern.permute.xlu0 2
      %806 = vperm.xlu0 %805, %v690
      %v807 = vpop.permute.xlu0 %806
      %v809 = vmul.f32 %v807, %v803
      %v810 = vmul.f32 %v807, %v804
      %v811 = vadd.f32 %v795, %v809
      %v812 = vadd.f32 %v796, %v810
      %813 = vrot.lane.b32.xlu0 %v762, 1
      %v814 = vpop.permute.xlu0 %813
      %815 = vrot.lane.b32.xlu0 %v763, 1
      %v816 = vpop.permute.xlu0 %815
      %v817 = vsel %vm562, %v814, %v816
      %v818 = vsel %vm562, %v816, %v814
      %v819 = vsel %vm567, %v818, 0.0
      %v820 = vsel %vm568, %v817, 0.0
      %821 = vset.pattern.permute.xlu0 3
      %822 = vperm.xlu0 %821, %v690
      %v823 = vpop.permute.xlu0 %822
      %v825 = vmul.f32 %v823, %v819
      %v826 = vmul.f32 %v823, %v820
      %v827 = vadd.f32 %v811, %v825
      %v828 = vadd.f32 %v812, %v826
      %829 = vset.pattern.permute.xlu0 4
      %830 = vperm.xlu0 %829, %v690
      %v831 = vpop.permute.xlu0 %830
      %v833 = vmul.f32 %v831, %v762
      %v834 = vmul.f32 %v831, %v763
      %v835 = vadd.f32 %v827, %v833
      %v836 = vadd.f32 %v828, %v834
      %837 = vrot.lane.b32.xlu0 %v762, 127
      %v838 = vpop.permute.xlu0 %837
      %839 = vrot.lane.b32.xlu0 %v763, 127
      %v840 = vpop.permute.xlu0 %839
      %v841 = vsel %vm591, %v838, %v840
      %v842 = vsel %vm591, %v840, %v838
      %v843 = vsel %vm596, %v841, 0.0
      %v844 = vsel %vm597, %v842, 0.0
      %845 = vset.pattern.permute.xlu0 5
      %846 = vperm.xlu0 %845, %v690
      %v847 = vpop.permute.xlu0 %846
      %v849 = vmul.f32 %v847, %v843
      %v850 = vmul.f32 %v847, %v844
      %v851 = vadd.f32 %v835, %v849
      %v852 = vadd.f32 %v836, %v850
      %853 = vrot.lane.b32.xlu0 %v762, 113
      %v854 = vpop.permute.xlu0 %853
      %855 = vrot.lane.b32.xlu0 %v763, 113
      %v856 = vpop.permute.xlu0 %855
      %v857 = vsel %vm612, %v854, %v856
      %v858 = vsel %vm612, %v856, %v854
      %v859 = vsel %vm617, %v857, 0.0
      %v860 = vsel %vm618, %v858, 0.0
      %861 = vset.pattern.permute.xlu0 6
      %862 = vperm.xlu0 %861, %v690
      %v863 = vpop.permute.xlu0 %862
      %v865 = vmul.f32 %v863, %v859
      %v866 = vmul.f32 %v863, %v860
      %v867 = vadd.f32 %v851, %v865
      %v868 = vadd.f32 %v852, %v866
      %869 = vrot.lane.b32.xlu0 %v762, 112
      %v870 = vpop.permute.xlu0 %869
      %871 = vrot.lane.b32.xlu0 %v763, 112
      %v872 = vpop.permute.xlu0 %871
      %v873 = vsel %vm633, %v870, %v872
      %v874 = vsel %vm633, %v872, %v870
      %v875 = vsel %vm638, %v873, 0.0
      %v876 = vsel %vm639, %v874, 0.0
      %877 = vset.pattern.permute.xlu0 7
      %878 = vperm.xlu0 %877, %v690
      %v879 = vpop.permute.xlu0 %878
      %v881 = vmul.f32 %v879, %v875
      %v882 = vmul.f32 %v879, %v876
      %v883 = vadd.f32 %v867, %v881
      %v884 = vadd.f32 %v868, %v882
      %885 = vrot.lane.b32.xlu0 %v762, 111
      %v886 = vpop.permute.xlu0 %885
      %887 = vrot.lane.b32.xlu0 %v763, 111
      %v888 = vpop.permute.xlu0 %887
      %v889 = vsel %vm654, %v886, %v888
      %v890 = vsel %vm654, %v888, %v886
      %v891 = vsel %vm659, %v889, 0.0
      %v892 = vsel %vm660, %v890, 0.0
      %893 = vset.pattern.permute.xlu0 8
      %894 = vperm.xlu0 %893, %v690
      %v895 = vpop.permute.xlu0 %894
      %v897 = vmul.f32 %v895, %v891
      %v898 = vmul.f32 %v895, %v892
      %v899 = vadd.f32 %v883, %v897
      %v900 = vadd.f32 %v884, %v898
      %902 = vset.pattern.permute.xlu0 0
      %903 = vperm.xlu0 %902, %v691
      %v904 = vpop.permute.xlu0 %903
      %v906 = vadd.f32 %v899, %v904
      %v907 = vadd.f32 %v900, %v904
      %v910 = vrot.slane %v906, 4
      %v911 = vrot.slane %v907, 4
      %v914 = vadd.f32 %v906, %v910
      %v915 = vadd.f32 %v907, %v911
      %v918 = vcombine.low %v914, %v915
      %920 = vst [vmem:[%s332] sm:$0xff] %v918
      %p921 = scmp.lt.s32.totalorder %s20, 1
      %s922 = scalar_select %p921, %s20, 1
      %s923 = smul.addr %s922, 2
      %s924 = smul.addr %s923, 4
      %s925 = scalar_lea.vmem %s9, %s924
      // Predicated region
      $region57: #{belly_block_forward.1} parent=55 // pred_check
        %p926 = pneg %p232
      $region58: #{belly_block_forward.1} parent=55 // pred_check_branch
        %928 = sbr.rel (%p926) target = $region60
      $region59: #{belly_block_forward.1} parent=55 // pred_region
        _
      $region60: #{belly_block_forward.1} parent=55 // pred_fallthru
        _
    $region56: #{belly_block_forward.1} parent=5 // pred_fallthru
      _
    %p929 = scmp.le.s32.totalorder 2, %s15
    // Predicated region
    $region61: #{belly_block_forward.1} parent=5 // pred_check
      %p930 = pneg %p929
    $region62: #{belly_block_forward.1} parent=5 // pred_check_branch
      %932 = sbr.rel (%p930) target = $region64
    $region63: #{belly_block_forward.1} parent=5 // pred_region
      %s933 = ssub.s32 %s15, 2
      // Predicated region
      $region65: #{belly_block_forward.1} parent=63 // pred_check
        %p934 = pneg %p238
      $region66: #{belly_block_forward.1} parent=63 // pred_check_branch
        %936 = sbr.rel (%p934) target = $region68
      $region67: #{belly_block_forward.1} parent=63 // pred_region
        %p937 = scmp.lt.s32.totalorder %s21, 1
        %s938 = scalar_select %p937, %s21, 1
        %s939 = smul.addr %s938, 2
        %s940 = smul.addr %s939, 4
        %s941 = scalar_lea.vmem %s9, %s940
      $region68: #{belly_block_forward.1} parent=63 // pred_fallthru
        _
    $region64: #{belly_block_forward.1} parent=5 // pred_fallthru
      _
  $region6: #{belly_block_forward.1} parent=0 // loop_footer
    %s19 = sadd.s32 1, %s15
  $region7: #{belly_block_forward.1} parent=0 // loop_footer_branch
    %14 = sbr.rel target = $region3
  $region8: #{belly_block_forward.1} parent=0 // loop_exit
    _

</llo_original>
